<compile_context>
chip_gen: v5e
topology: v5e:2x2
jax: 0.10.0
libtpu: 0.0.40
codegen_flags: <defaults>
</compile_context>

<pallas_src>
import functools

import jax
import jax.numpy as jnp
import numpy as np
from jax.experimental import pallas as pl
from jax.experimental.pallas import tpu as pltpu

BN_EPS = 1e-5
_VMEM_LIMIT = 32 * 1024 * 1024   # explicit scoped-VMEM budget (safe on v5e/v6e/v7x)


def _cparams(n_axes):
    return pltpu.CompilerParams(
        dimension_semantics=("parallel",) * n_axes,
        vmem_limit_bytes=_VMEM_LIMIT)


def _row_tile(M, target=512):
    """Largest row tile dividing M with tile <= target.

    Only split when both halves stay >= 256 rows (keeps >=2 parallel grid steps
    for v7x megacore while staying near the HBM roofline on v5e/v6e).
    """
    if M <= target:
        if M > 256 and M % 2 == 0 and (M // 2) % 8 == 0:
            return M // 2
        return M
    best = 1
    for tm in range(8, target + 1, 8):       # largest multiple-of-8 divisor
        if M % tm == 0:
            best = tm
    if best == 1:
        for tm in range(1, target + 1):      # fallback: any divisor
            if M % tm == 0:
                best = tm
    return best


def _bn_scale_shift(stats, count, gamma, beta):
    """Fold BN batch statistics (sum / sumsq rows) into per-channel scale & shift."""
    mean = stats[0] / count
    var = jnp.maximum(stats[1] / count - mean * mean, 0.0)   # guard cancellation
    scale = gamma * jax.lax.rsqrt(var + BN_EPS)
    return scale, beta - mean * scale


# ----------------------------------------------------------------------------
# Kernel 1: conv1 (1x1, Cin -> D) as one dense matmul + BN1 statistics
# ----------------------------------------------------------------------------
def _conv1_kernel(x_ref, w_ref, y_ref, st_ref):
    y = jnp.dot(x_ref[...], w_ref[...], preferred_element_type=jnp.float32)  # (tm, D)
    y_ref[...] = y.astype(y_ref.dtype)
    st_ref[0] = jnp.concatenate(
        [jnp.sum(y, axis=0, keepdims=True),
         jnp.sum(y * y, axis=0, keepdims=True)], axis=0)


def conv1_dense(x2d, w):
    # x2d: (M, Cin) bf16;  w: (Cin, D) bf16
    M, Cin = x2d.shape
    D = w.shape[1]
    tm = _row_tile(M)
    nt = M // tm
    return pl.pallas_call(
        _conv1_kernel,
        out_shape=(jax.ShapeDtypeStruct((M, D), jnp.bfloat16),
                   jax.ShapeDtypeStruct((nt, 2, D), jnp.float32)),
        grid_spec=pltpu.PrefetchScalarGridSpec(
            num_scalar_prefetch=0, grid=(nt,),
            in_specs=[pl.BlockSpec((tm, Cin), lambda i: (i, 0)),
                      pl.BlockSpec((Cin, D), lambda i: (0, 0))],
            out_specs=[pl.BlockSpec((tm, D), lambda i: (i, 0)),
                       pl.BlockSpec((1, 2, D), lambda i: (i, 0, 0))]),
        compiler_params=_cparams(1),
    )(x2d, w)


# ----------------------------------------------------------------------------
# Kernel 2: grouped 3x3 conv as 9 block-diagonal (D, D) tap matmuls
#   * BN1 affine + ReLU fused on the unpadded channel-last tile
#   * zero padding done in-kernel via a pre-zeroed VMEM scratch
#   * register accumulation; BN2 statistics emitted per sample
# ----------------------------------------------------------------------------
def _gconv3x3_kernel(x_ref, sc_ref, sh_ref, w_ref, y_ref, st_ref, pad_ref,
                     *, H, W, Ho, Wo, stride):
    D = x_ref.shape[-1]

    # BN1 affine + ReLU in f32, one bf16 cast for the MXU.
    a = jnp.maximum(x_ref[0].astype(jnp.float32) * sc_ref[...] + sh_ref[...], 0.0)
    a = a.astype(jnp.bfloat16)

    # In-kernel zero padding: zero the scratch, write the interior.
    pad_ref[...] = jnp.zeros_like(pad_ref)
    pad_ref[1:H + 1, 1:W + 1, :] = a

    hspan = (Ho - 1) * stride + 1
    wspan = (Wo - 1) * stride + 1
    acc = jnp.zeros((Ho * Wo, D), jnp.float32)
    for ky in range(3):                                   # static unroll: 9 MXU matmuls
        for kx in range(3):
            win = pad_ref[ky:ky + hspan, kx:kx + wspan, :]
            if stride > 1:
                # TODO(synk): for stride>1 pre-split even/odd planes instead of a
                # strided value slice (minor relayout cost).
                win = win[::stride, ::stride, :]
            acc = acc + jnp.dot(win.reshape(Ho * Wo, D), w_ref[ky, kx],
                                preferred_element_type=jnp.float32)

    y_ref[...] = acc.astype(y_ref.dtype)
    st_ref[0] = jnp.concatenate(
        [jnp.sum(acc, axis=0, keepdims=True),
         jnp.sum(acc * acc, axis=0, keepdims=True)], axis=0)


def grouped_conv3x3(y1, sc1, sh1, w2bd, *, N, H, W, Ho, Wo, stride):
    # y1: (N*H*W, D) bf16 channel-last; sc1/sh1: (1, D) f32; w2bd: (3,3,D,D) bf16
    D = y1.shape[-1]
    Hp, Wp = H + 2, W + 2
    kern = functools.partial(_gconv3x3_kernel, H=H, W=W, Ho=Ho, Wo=Wo, stride=stride)
    return pl.pallas_call(
        kern,
        out_shape=(jax.ShapeDtypeStruct((N * Ho * Wo, D), jnp.bfloat16),
                   jax.ShapeDtypeStruct((N, 2, D), jnp.float32)),
        grid_spec=pltpu.PrefetchScalarGridSpec(
            num_scalar_prefetch=0, grid=(N,),
            in_specs=[pl.BlockSpec((1, H, W, D), lambda n: (n, 0, 0, 0)),
                      pl.BlockSpec((1, D), lambda n: (0, 0)),
                      pl.BlockSpec((1, D), lambda n: (0, 0)),
                      pl.BlockSpec((3, 3, D, D), lambda n: (0, 0, 0, 0))],
            out_specs=[pl.BlockSpec((Ho * Wo, D), lambda n: (n, 0)),
                       pl.BlockSpec((1, 2, D), lambda n: (n, 0, 0))],
            scratch_shapes=[pltpu.VMEM((Hp, Wp, D), jnp.bfloat16)]),
        compiler_params=_cparams(1),
    )(y1.reshape(N, H, W, D), sc1, sh1, w2bd)


# ----------------------------------------------------------------------------
# Kernel 3: conv3 (1x1, D -> Cout) with fused BN2 affine + ReLU, emitting BN3
#           statistics AND the shortcut's BN_s statistics (shortcut value is
#           recomputed later, never written to HBM).
# ----------------------------------------------------------------------------
def _conv3_kernel(y2_ref, sc_ref, sh_ref, w3_ref, xs_ref, ws_ref,
                  y3_ref, st3_ref, sts_ref):
    a = jnp.maximum(y2_ref[...].astype(jnp.float32) * sc_ref[...] + sh_ref[...], 0.0)
    y3 = jnp.dot(a.astype(jnp.bfloat16), w3_ref[...],
                 preferred_element_type=jnp.float32)
    y3_ref[...] = y3.astype(y3_ref.dtype)
    st3_ref[0] = jnp.concatenate(
        [jnp.sum(y3, axis=0, keepdims=True),
         jnp.sum(y3 * y3, axis=0, keepdims=True)], axis=0)
    r = jnp.dot(xs_ref[...], ws_ref[...], preferred_element_type=jnp.float32)
    sts_ref[0] = jnp.concatenate(
        [jnp.sum(r, axis=0, keepdims=True),
         jnp.sum(r * r, axis=0, keepdims=True)], axis=0)


def conv3_and_shortcut_stats(y2, sc2, sh2, w3, xs, ws):
    # y2: (M2, D) bf16; xs: (M2, Cin) bf16; w3: (D, Cout) bf16; ws: (Cin, Cout) bf16
    M2, D = y2.shape
    Cin = xs.shape[-1]
    Cout = w3.shape[-1]
    tm = _row_tile(M2)
    nt = M2 // tm
    return pl.pallas_call(
        _conv3_kernel,
        out_shape=(jax.ShapeDtypeStruct((M2, Cout), jnp.bfloat16),
                   jax.ShapeDtypeStruct((nt, 2, Cout), jnp.float32),
                   jax.ShapeDtypeStruct((nt, 2, Cout), jnp.float32)),
        grid_spec=pltpu.PrefetchScalarGridSpec(
            num_scalar_prefetch=0, grid=(nt,),
            in_specs=[pl.BlockSpec((tm, D), lambda i: (i, 0)),
                      pl.BlockSpec((1, D), lambda i: (0, 0)),
                      pl.BlockSpec((1, D), lambda i: (0, 0)),
                      pl.BlockSpec((D, Cout), lambda i: (0, 0)),
                      pl.BlockSpec((tm, Cin), lambda i: (i, 0)),
                      pl.BlockSpec((Cin, Cout), lambda i: (0, 0))],
            out_specs=[pl.BlockSpec((tm, Cout), lambda i: (i, 0)),
                       pl.BlockSpec((1, 2, Cout), lambda i: (i, 0, 0)),
                       pl.BlockSpec((1, 2, Cout), lambda i: (i, 0, 0))]),
        compiler_params=_cparams(1),
    )(y2, sc2, sh2, w3, xs, ws)


# ----------------------------------------------------------------------------
# Kernel 4: epilogue — recompute shortcut 1x1 conv in-kernel, apply BN3 + BN_s,
#           residual add, ReLU.
# ----------------------------------------------------------------------------
def _epilogue_kernel(y3_ref, xs_ref, ws_ref, s3_ref, b3_ref, ss_ref, bs_ref, o_ref):
    r = jnp.dot(xs_ref[...], ws_ref[...], preferred_element_type=jnp.float32)
    t = y3_ref[...].astype(jnp.float32) * s3_ref[...] + b3_ref[...]
    o_ref[...] = jnp.maximum(t + r * ss_ref[...] + bs_ref[...], 0.0)


def bn_add_relu(y3, xs, ws, s3, b3, ss, bs):
    M2, Cout = y3.shape
    Cin = xs.shape[-1]
    tm = _row_tile(M2)
    nt = M2 // tm
    return pl.pallas_call(
        _epilogue_kernel,
        out_shape=jax.ShapeDtypeStruct((M2, Cout), jnp.float32),
        grid_spec=pltpu.PrefetchScalarGridSpec(
            num_scalar_prefetch=0, grid=(nt,),
            in_specs=[pl.BlockSpec((tm, Cout), lambda i: (i, 0)),
                      pl.BlockSpec((tm, Cin), lambda i: (i, 0)),
                      pl.BlockSpec((Cin, Cout), lambda i: (0, 0)),
                      pl.BlockSpec((1, Cout), lambda i: (0, 0)),
                      pl.BlockSpec((1, Cout), lambda i: (0, 0)),
                      pl.BlockSpec((1, Cout), lambda i: (0, 0)),
                      pl.BlockSpec((1, Cout), lambda i: (0, 0))],
            out_specs=pl.BlockSpec((tm, Cout), lambda i: (i, 0))),
        compiler_params=_cparams(1),
    )(y3, xs, ws, s3, b3, ss, bs)


# ----------------------------------------------------------------------------
# Module wrapper (parameter setup + tiny per-channel BN folding in plain JAX)
# ----------------------------------------------------------------------------
class ResNeXtBottleneckPallas:
    def __init__(self, key, in_channels, out_channels, cardinality,
                 base_width, widen_factor, stride):
        width_ratio = out_channels / (widen_factor * 64.0)
        D = cardinality * int(base_width * width_ratio)
        assert D % cardinality == 0
        Cg = D // cardinality

        self.in_channels = in_channels
        self.out_channels = out_channels
        self.cardinality = cardinality
        self.stride = stride
        self.D = D
        self.Cg = Cg

        keys = jax.random.split(key, 12)

        def param(k, shape, scale=0.1):
            # conv parameters are stored at bf16 precision (the MXU input
            # precision); the f32 XLA reference consumes exactly these values.
            w = jax.random.normal(k, shape, jnp.float32) * scale
            return w.astype(jnp.bfloat16).astype(jnp.float32)

        # PyTorch OIHW layout (f32 holders of bf16-precise values), for reference
        self.w1_pt = param(keys[0], (D, in_channels, 1, 1))
        self.w2_pt = param(keys[1], (D, Cg, 3, 3))
        self.w3_pt = param(keys[2], (out_channels, D, 1, 1))
        self.ws_pt = param(keys[3], (out_channels, in_channels, 1, 1))

        # matmul-layout (channel-last) weights, bf16 MXU inputs
        self.w1 = self.w1_pt[:, :, 0, 0].T.astype(jnp.bfloat16)            # (Cin, D)
        blocks = self.w2_pt.reshape(cardinality, Cg, Cg, 3, 3)             # (g, oc, ic, ky, kx)
        w2bd = jnp.zeros((3, 3, D, D), jnp.float32)
        for g in range(cardinality):
            blk = jnp.transpose(blocks[g], (2, 3, 1, 0))                   # (ky, kx, ic, oc)
            w2bd = w2bd.at[:, :, g * Cg:(g + 1) * Cg, g * Cg:(g + 1) * Cg].set(blk)
        self.w2bd = w2bd.astype(jnp.bfloat16)                              # block-diag (3,3,D,D)
        self.w3 = self.w3_pt[:, :, 0, 0].T.astype(jnp.bfloat16)            # (D, Cout)
        self.ws = self.ws_pt[:, :, 0, 0].T.astype(jnp.bfloat16)            # (Cin, Cout)

        # BatchNorm affine params (f32, shared by kernel path and reference)
        self.bn1_g = 1.0 + 0.1 * jax.random.normal(keys[4], (D,), jnp.float32)
        self.bn1_b = 0.1 * jax.random.normal(keys[5], (D,), jnp.float32)
        self.bn2_g = 1.0 + 0.1 * jax.random.normal(keys[6], (D,), jnp.float32)
        self.bn2_b = 0.1 * jax.random.normal(keys[7], (D,), jnp.float32)
        self.bn3_g = 1.0 + 0.1 * jax.random.normal(keys[8], (out_channels,), jnp.float32)
        self.bn3_b = 0.1 * jax.random.normal(keys[9], (out_channels,), jnp.float32)
        self.bns_g = 1.0 + 0.1 * jax.random.normal(keys[10], (out_channels,), jnp.float32)
        self.bns_b = 0.1 * jax.random.normal(keys[11], (out_channels,), jnp.float32)

    def __call__(self, x_nchw):
        N, Cin, H, W = x_nchw.shape
        s = self.stride
        D, Cout = self.D, self.out_channels
        Ho = (H - 1) // s + 1
        Wo = (W - 1) // s + 1
        M = N * H * W
        M2 = N * Ho * Wo

        # NCHW -> NHWC + one bf16 cast at the module boundary (boundary XLA op).
        x = jnp.transpose(x_nchw, (0, 2, 3, 1)).astype(jnp.bfloat16)       # (N,H,W,Cin)

        # conv1 (dense 1x1) + BN1 stats ------------------------------------
        y1, st1 = conv1_dense(x.reshape(M, Cin), self.w1)                  # (M,D) bf16
        sc1, sh1 = _bn_scale_shift(st1.sum(0), M, self.bn1_g, self.bn1_b)

        # grouped 3x3 conv (fused BN1 affine+ReLU, in-kernel pad) + BN2 stats
        y2, st2 = grouped_conv3x3(y1, sc1.reshape(1, D), sh1.reshape(1, D),
                                  self.w2bd, N=N, H=H, W=W, Ho=Ho, Wo=Wo, stride=s)
        sc2, sh2 = _bn_scale_shift(st2.sum(0), M2, self.bn2_g, self.bn2_b)

        # conv3 (dense 1x1, fused BN2 affine+ReLU) + BN3 stats + BN_s stats --
        xs = x[:, ::s, ::s, :].reshape(M2, Cin)
        y3, st3, sts = conv3_and_shortcut_stats(
            y2, sc2.reshape(1, D), sh2.reshape(1, D), self.w3, xs, self.ws)
        sc3, sh3 = _bn_scale_shift(st3.sum(0), M2, self.bn3_g, self.bn3_b)
        scs, shs = _bn_scale_shift(sts.sum(0), M2, self.bns_g, self.bns_b)

        # epilogue: recompute shortcut, BN3 + BN_s + add + ReLU --------------
        out = bn_add_relu(y3, xs, self.ws,
                          sc3.reshape(1, Cout), sh3.reshape(1, Cout),
                          scs.reshape(1, Cout), shs.reshape(1, Cout))
        out = out.reshape(N, Ho, Wo, Cout)
        return jnp.transpose(out, (0, 3, 1, 2))                            # back to NCHW

    # pure-JAX (XLA, f32 activations) reference of the same forward pass
    def reference(self, x):
        def conv(x, w, stride=1, padding="VALID", groups=1):
            return jax.lax.conv_general_dilated(
                x, w, window_strides=(stride, stride), padding=padding,
                feature_group_count=groups,
                dimension_numbers=("NCHW", "OIHW", "NCHW"))

        def bn(x, g, b):
            mean = jnp.mean(x, axis=(0, 2, 3), keepdims=True)
            var = jnp.mean((x - mean) ** 2, axis=(0, 2, 3), keepdims=True)
            xn = (x - mean) / jnp.sqrt(var + BN_EPS)
            return xn * g.reshape(1, -1, 1, 1) + b.reshape(1, -1, 1, 1)

        t = conv(x, self.w1_pt)
        t = jax.nn.relu(bn(t, self.bn1_g, self.bn1_b))
        t = conv(t, self.w2_pt, stride=self.stride,
                 padding=((1, 1), (1, 1)), groups=self.cardinality)
        t = jax.nn.relu(bn(t, self.bn2_g, self.bn2_b))
        t = conv(t, self.w3_pt)
        t = bn(t, self.bn3_g, self.bn3_b)
        r = conv(x, self.ws_pt, stride=self.stride)
        r = bn(r, self.bns_g, self.bns_b)
        return jax.nn.relu(t + r)


if __name__ == "__main__":
    # module-consistent small configuration:
    # in=32, out=64, cardinality=2, base_width=32, widen_factor=1 -> D=64, Cg=32
    in_channels, out_channels = 32, 64
    cardinality, base_width, widen_factor, stride = 2, 32, 1, 1

    key = jax.random.PRNGKey(0)
    kx_, kp_ = jax.random.split(key)
    x = jax.random.normal(kx_, (2, in_channels, 16, 16), jnp.float32)      # NCHW like PyTorch

    block = ResNeXtBottleneckPallas(kp_, in_channels, out_channels,
                                    cardinality, base_width, widen_factor, stride)

    out = jax.block_until_ready(block(x))
    ref = jax.block_until_ready(block.reference(x))

    assert out.shape == ref.shape, (out.shape, ref.shape)
    # Tolerance covers bf16 activation storage + bf16 MXU inputs across
    # 4 convs and 4 batch-normalizations vs the f32-activation reference
    # (~10 bf16 ulps at unit activation scale).
    np.testing.assert_allclose(np.asarray(out), np.asarray(ref), rtol=3e-2, atol=4e-2)

    print("KERNEL_OK")
</pallas_src>

<mosaic_0001>
module attributes {stable_mosaic.version = 11 : i64} {
  func.func @_conv1_kernel(%arg0: i32, %arg1: memref<256x32xbf16, #tpu.memory_space<vmem>>, %arg2: memref<32x64xbf16, #tpu.memory_space<vmem>>, %arg3: memref<256x64xbf16, #tpu.memory_space<vmem>>, %arg4: memref<1x2x64xf32, #tpu.memory_space<vmem>>) attributes {dimension_semantics = [#tpu.dimension_semantics<parallel>], iteration_bounds = array<i64: 2>, scalar_prefetch = 0 : i64, scratch_operands = 0 : i64, tpu.core_type = #tpu.core_type<tc>, window_params = [{transform_indices = @transform_0, window_bounds = array<i64: 256, 32>}, {pipeline_mode = #tpu.pipeline_mode<synchronous>, transform_indices = @transform_1, window_bounds = array<i64: 32, 64>}, {transform_indices = @transform_2, window_bounds = array<i64: 256, 64>}, {transform_indices = @transform_3, window_bounds = array<i64: 1, 2, 64>}]} {
    %c0 = arith.constant 0 : index
    %c0_0 = arith.constant 0 : index
    %0 = vector.load %arg1[%c0, %c0_0] : memref<256x32xbf16, #tpu.memory_space<vmem>>, vector<256x32xbf16>
    %c0_1 = arith.constant 0 : index
    %c0_2 = arith.constant 0 : index
    %1 = vector.load %arg2[%c0_1, %c0_2] : memref<32x64xbf16, #tpu.memory_space<vmem>>, vector<32x64xbf16>
    %cst = arith.constant dense<0.000000e+00> : vector<256x64xf32>
    %2 = tpu.matmul %0, %1, %cst {dimension_numbers = #tpu.dot_dimension_numbers<[1], [0], [0], [1], [0, 0, 1, 1], [], []>} : vector<256x32xbf16>, vector<32x64xbf16>, vector<256x64xf32> -> vector<256x64xf32>
    %3 = arith.truncf %2 : vector<256x64xf32> to vector<256x64xbf16>
    %c0_3 = arith.constant 0 : index
    %c0_4 = arith.constant 0 : index
    %4 = vector.load %arg3[%c0_3, %c0_4] : memref<256x64xbf16, #tpu.memory_space<vmem>>, vector<256x64xbf16>
    tpu.vector_store %arg3[%c0_3, %c0_4], %3 {strides = array<i32>} : memref<256x64xbf16, #tpu.memory_space<vmem>>, vector<256x64xbf16>,
    %cst_5 = arith.constant dense<0.000000e+00> : vector<64xf32>
    %5 = vector.multi_reduction <add>, %2, %cst_5 [0] : vector<256x64xf32> to vector<64xf32>
    %6 = vector.shape_cast %5 : vector<64xf32> to vector<1x64xf32>
    %7 = arith.mulf %2, %2 : vector<256x64xf32>
    %cst_6 = arith.constant dense<0.000000e+00> : vector<64xf32>
    %8 = vector.multi_reduction <add>, %7, %cst_6 [0] : vector<256x64xf32> to vector<64xf32>
    %9 = vector.shape_cast %8 : vector<64xf32> to vector<1x64xf32>
    %10 = tpu.concatenate %6, %9 in 0 : vector<1x64xf32>, vector<1x64xf32> -> vector<2x64xf32>
    %c0_7 = arith.constant 0 : index
    %c0_8 = arith.constant 0 : index
    %c0_9 = arith.constant 0 : index
    %11 = vector.load %arg4[%c0_7, %c0_8, %c0_9] : memref<1x2x64xf32, #tpu.memory_space<vmem>>, vector<1x2x64xf32>
    %12 = vector.shape_cast %11 : vector<1x2x64xf32> to vector<2x64xf32>
    %13 = vector.shape_cast %10 : vector<2x64xf32> to vector<1x2x64xf32>
    tpu.vector_store %arg4[%c0_7, %c0_8, %c0_9], %13 {strides = array<i32>} : memref<1x2x64xf32, #tpu.memory_space<vmem>>, vector<1x2x64xf32>,
    return
  }
  func.func @transform_0(%arg0: i32) -> (i32, i32) {
    %c0_i32 = arith.constant 0 : i32
    %c0_i32_0 = arith.constant 0 : i32
    return %arg0, %c0_i32 : i32, i32
  }
  func.func @transform_1(%arg0: i32) -> (i32, i32) {
    %c0_i32 = arith.constant 0 : i32
    %c0_i32_0 = arith.constant 0 : i32
    %c0_i32_1 = arith.constant 0 : i32
    return %c0_i32, %c0_i32_0 : i32, i32
  }
  func.func @transform_2(%arg0: i32) -> (i32, i32) {
    %c0_i32 = arith.constant 0 : i32
    %c0_i32_0 = arith.constant 0 : i32
    return %arg0, %c0_i32 : i32, i32
  }
  func.func @transform_3(%arg0: i32) -> (i32, i32, i32) {
    %c0_i32 = arith.constant 0 : i32
    %c0_i32_0 = arith.constant 0 : i32
    %c0_i32_1 = arith.constant 0 : i32
    return %arg0, %c0_i32, %c0_i32_0 : i32, i32, i32
  }
}

</mosaic_0001>

<llo_original>
// kernel: tpu_custom_call.1
$region0: #{tpu_custom_call.1}
  #allocation0 [shape = 'u32[]', space=smem, size = 0x4, offset = 0x4, fixed_abs, tag = 'smem constant byte address 0x4 - core index']
  #allocation1 [shape = 'u32[72,128]{1,0:T(1,128)}', space=vmem, size = 0x9000, scoped, tag = 'internal scratch']
  %s0 = inlined_call_operand.vmem [shape: bf16[512,32], index: 0, kind: input, shape index: {}]
  %s1 = inlined_call_operand.vmem [shape: bf16[32,64], index: 1, kind: input, shape index: {}]
  %s2 = inlined_call_operand.vmem [shape: bf16[512,64], index: 2, kind: output, shape index: {0}]
  %s3 = inlined_call_operand.hbm [shape: f32[2,2,64], index: 3, kind: output, shape index: {1}]
  %4 = xla_tuple %s2, %s3
  %s5 = sld [smem:[#allocation0]]
  $region49: #{tpu_custom_call.1} parent=0
    _
  %s7 = ssub.s32 1, %s5
  %s8 = scalar_select 0, %s7, %s5
  $region1: #{tpu_custom_call.1} parent=0
    #allocation2 [shape = 'u8[2048]{0}', space=vmem, size = 0x800, scoped, tag = 'output window, operand 1']
    #allocation3 [shape = 's32[2]{0}', space=sflag, size = 0x8, scoped, tag = 'scoped memory for tpu_custom_call.1']
    %9 = vsyncpa [#allocation3], 0
    %s10 = scalar_lea.sflag [#allocation3], 1
    %11 = vsyncpa %s10, 0
    loop: start=0, step=1, limit=4
    $region2: #{tpu_custom_call.1} parent=1 // loop_pre_header
      _
    $region3: #{tpu_custom_call.1} parent=1 // loop_header
      %s13 = sphi 0, %s17
      %p14 = scmp.ge.s32.totalorder %s13, 4
      %s23 = sphi 0, %s25
      %s26 = sphi 0, %s23
      %s27 = sphi 0, %s26
      %s43 = sphi 0, %s27
      %s47 = sphi 0, %s47
      %s49 = sphi 0, %s47
      %s50 = sphi 0, %s49
      %s64 = sphi 0, %s50
      %s70 = sphi 0, %s72
      %s73 = sphi 0, %s70
      %s74 = sphi 0, %s73
      %s90 = sphi 0, %s74
      %s96 = sphi 0, %s98
      %s99 = sphi 0, %s96
      %s100 = sphi 0, %s99
      %s116 = sphi 0, %s100
    $region4: #{tpu_custom_call.1} parent=1 // loop_header_branch
      %16 = sbr.rel (%p14) target = $region8
    $region5: #{tpu_custom_call.1} parent=1 // loop_body
      %s18 = ssub.s32 %s13, 1
      %s19 = ssub.s32 %s13, 2
      %s20 = sadd.s32 %s13, 1
      %s21 = ssub.s32 %s13, %s20
      %p22 = scmp.eq.s32.totalorder %s21, 0
      %s24 = sadd.s32 %s23, 1
      %s25 = scalar_select %p22, %s23, %s24
      %p28 = pneg %p22
      %p29 = scmp.eq.s32.totalorder %s13, 1
      %p30 = por %p28, %p29
      %p31 = scmp.ne.s32.totalorder %s23, %s26
      %p32 = scmp.eq.s32.totalorder %s13, 0
      %p33 = por %p31, %p32
      %p34 = scmp.ne.s32.totalorder %s23, %s26
      %p35 = scmp.eq.s32.totalorder %s18, 1
      %p36 = por %p34, %p35
      %p37 = scmp.ne.s32.totalorder %s26, %s27
      %p38 = scmp.eq.s32.totalorder %s18, 0
      %p39 = por %p37, %p38
      %p40 = scmp.ne.s32.totalorder %s26, %s27
      %p41 = scmp.eq.s32.totalorder %s19, 1
      %p42 = por %p40, %p41
      %p44 = scmp.ne.s32.totalorder %s27, %s43
      %p45 = scmp.eq.s32.totalorder %s19, 0
      %p46 = por %p44, %p45
      %s48 = sadd.s32 %s47, 1
      %p51 = scmp.eq.s32.totalorder %s13, 1
      %p52 = scmp.ne.s32.totalorder %s47, %s49
      %p53 = scmp.eq.s32.totalorder %s13, 0
      %p54 = por %p52, %p53
      %p55 = scmp.ne.s32.totalorder %s47, %s49
      %p56 = scmp.eq.s32.totalorder %s18, 1
      %p57 = por %p55, %p56
      %p58 = scmp.ne.s32.totalorder %s49, %s50
      %p59 = scmp.eq.s32.totalorder %s18, 0
      %p60 = por %p58, %p59
      %p61 = scmp.ne.s32.totalorder %s49, %s50
      %p62 = scmp.eq.s32.totalorder %s19, 1
      %p63 = por %p61, %p62
      %p65 = scmp.ne.s32.totalorder %s50, %s64
      %p66 = scmp.eq.s32.totalorder %s19, 0
      %p67 = por %p65, %p66
      %s68 = ssub.s32 %s13, %s20
      %p69 = scmp.eq.s32.totalorder %s68, 0
      %s71 = sadd.s32 %s70, 1
      %s72 = scalar_select %p69, %s70, %s71
      %p75 = pneg %p69
      %p76 = scmp.eq.s32.totalorder %s13, 1
      %p77 = por %p75, %p76
      %p78 = scmp.ne.s32.totalorder %s70, %s73
      %p79 = scmp.eq.s32.totalorder %s13, 0
      %p80 = por %p78, %p79
      %p81 = scmp.ne.s32.totalorder %s70, %s73
      %p82 = scmp.eq.s32.totalorder %s18, 1
      %p83 = por %p81, %p82
      %p84 = scmp.ne.s32.totalorder %s73, %s74
      %p85 = scmp.eq.s32.totalorder %s18, 0
      %p86 = por %p84, %p85
      %p87 = scmp.ne.s32.totalorder %s73, %s74
      %p88 = scmp.eq.s32.totalorder %s19, 1
      %p89 = por %p87, %p88
      %p91 = scmp.ne.s32.totalorder %s74, %s90
      %p92 = scmp.eq.s32.totalorder %s19, 0
      %p93 = por %p91, %p92
      %s94 = ssub.s32 %s13, %s20
      %p95 = scmp.eq.s32.totalorder %s94, 0
      %s97 = sadd.s32 %s96, 1
      %s98 = scalar_select %p95, %s96, %s97
      %p101 = pneg %p95
      %p102 = scmp.eq.s32.totalorder %s13, 1
      %p103 = por %p101, %p102
      %p104 = scmp.ne.s32.totalorder %s96, %s99
      %p105 = scmp.eq.s32.totalorder %s13, 0
      %p106 = por %p104, %p105
      %p107 = scmp.ne.s32.totalorder %s96, %s99
      %p108 = scmp.eq.s32.totalorder %s18, 1
      %p109 = por %p107, %p108
      %p110 = scmp.ne.s32.totalorder %s99, %s100
      %p111 = scmp.eq.s32.totalorder %s18, 0
      %p112 = por %p110, %p111
      %p113 = scmp.ne.s32.totalorder %s99, %s100
      %p114 = scmp.eq.s32.totalorder %s19, 1
      %p115 = por %p113, %p114
      %p117 = scmp.ne.s32.totalorder %s100, %s116
      %p118 = scmp.eq.s32.totalorder %s19, 0
      %p119 = por %p117, %p118
      %p120 = scmp.le.s32.totalorder 1, %s13
      %p121 = scmp.lt.s32.totalorder %s13, 3
      %p122 = pnand %p120, %p121
      %p123 = pneg %p122
      // Predicated region
      $region9: #{tpu_custom_call.1} parent=5 // pred_check
        _
      $region10: #{tpu_custom_call.1} parent=5 // pred_check_branch
        %125 = sbr.rel (%p122) target = $region12
      $region11: #{tpu_custom_call.1} parent=5 // pred_region
        %s126 = ssub.s32 %s13, 1
        // Predicated region
        $region13: #{tpu_custom_call.1} parent=11 // pred_check
          %p127 = pneg %p60
        $region14: #{tpu_custom_call.1} parent=11 // pred_check_branch
          %129 = sbr.rel (%p127) target = $region16
        $region15: #{tpu_custom_call.1} parent=11 // pred_region
          _
        $region16: #{tpu_custom_call.1} parent=11 // pred_fallthru
          _
      $region12: #{tpu_custom_call.1} parent=5 // pred_fallthru
        _
      %p130 = scmp.lt.s32.totalorder %s13, 2
      // Predicated region
      $region17: #{tpu_custom_call.1} parent=5 // pred_check
        %p131 = pneg %p130
      $region18: #{tpu_custom_call.1} parent=5 // pred_check_branch
        %133 = sbr.rel (%p131) target = $region20
      $region19: #{tpu_custom_call.1} parent=5 // pred_region
        // Predicated region
        $region21: #{tpu_custom_call.1} parent=19 // pred_check
          %p134 = pneg %p33
        $region22: #{tpu_custom_call.1} parent=19 // pred_check_branch
          %136 = sbr.rel (%p134) target = $region24
        $region23: #{tpu_custom_call.1} parent=19 // pred_region
          %s137 = smul.u32 32, %s13
          %p138 = scmp.lt.s32.totalorder %s137, 63
          %s139 = scalar_select %p138, %s137, 63
          %s140 = smul.addr %s139, 4
          %s141 = scalar_lea.vmem %s0, %s140
          %s142 = smul.u32 32, %s13
        $region24: #{tpu_custom_call.1} parent=19 // pred_fallthru
          _
      $region20: #{tpu_custom_call.1} parent=5 // pred_fallthru
        _
      %p143 = scmp.le.s32.totalorder 1, %s13
      %p144 = scmp.lt.s32.totalorder %s13, 3
      %p145 = pnand %p143, %p144
      %p146 = pneg %p145
      // Predicated region
      $region25: #{tpu_custom_call.1} parent=5 // pred_check
        _
      $region26: #{tpu_custom_call.1} parent=5 // pred_check_branch
        %148 = sbr.rel (%p145) target = $region28
      $region27: #{tpu_custom_call.1} parent=5 // pred_region
        %s149 = ssub.s32 %s13, 1
        %s150 = smul.u32 32, %s18
        %p151 = scmp.lt.s32.totalorder %s150, 63
        %s152 = scalar_select %p151, %s150, 63
        %s153 = smul.addr %s152, 4
        %s154 = scalar_lea.vmem %s0, %s153
        %p155 = pneg %p39
        %p156 = pneg %p36
        %p157 = pneg %p60
        %p158 = pneg %p57
        %p159 = pneg %p86
        %p160 = pneg %p83
        %s161 = smul.u32 32, %s18
        %p162 = scmp.lt.s32.totalorder %s161, 63
        %s163 = scalar_select %p162, %s161, 63
        %s164 = smul.addr %s163, 4
        %s165 = scalar_lea.vmem %s2, %s164
        %p166 = pneg %p112
        %p167 = pneg %p109
        %s168 = sand.u32 %s99, 1
        %s169 = scalar_lea.sflag [#allocation3], %s168
        %s170 = sand.u32 %s99, 1
        %s171 = smul.addr %s170, 2
        %s172 = scalar_lea.vmem [#allocation2], %s171
        %s173 = smul.u32 32, %s18
        %p174 = scmp.lt.s32.totalorder %s173, 63
        %s175 = scalar_select %p174, %s173, 63
        %s176 = smul.addr %s175, 4
        %s177 = scalar_lea.vmem %s0, %s176
        %s178 = smul.u32 32, %s18
        %s179 = smul.u32 32, %s18
        %p180 = scmp.lt.s32.totalorder %s179, 63
        %s181 = scalar_select %p180, %s179, 63
        %s182 = smul.addr %s181, 4
        %s183 = scalar_lea.vmem %s2, %s182
        %s184 = smul.u32 32, %s18
        %v186 = vld [vmem:[%s177] sm:$0xf]
        %v187 = vld [vmem:[%s177 + $0x4] sm:$0xf]
        %v188 = vld [vmem:[%s177 + $0x8] sm:$0xf]
        %v189 = vld [vmem:[%s177 + $0xc] sm:$0xf]
        %v190 = vld [vmem:[%s177 + $0x10] sm:$0xf]
        %v191 = vld [vmem:[%s177 + $0x14] sm:$0xf]
        %v192 = vld [vmem:[%s177 + $0x18] sm:$0xf]
        %v193 = vld [vmem:[%s177 + $0x1c] sm:$0xf]
        %v194 = vld [vmem:[%s177 + $0x20] sm:$0xf]
        %v195 = vld [vmem:[%s177 + $0x24] sm:$0xf]
        %v196 = vld [vmem:[%s177 + $0x28] sm:$0xf]
        %v197 = vld [vmem:[%s177 + $0x2c] sm:$0xf]
        %v198 = vld [vmem:[%s177 + $0x30] sm:$0xf]
        %v199 = vld [vmem:[%s177 + $0x34] sm:$0xf]
        %v200 = vld [vmem:[%s177 + $0x38] sm:$0xf]
        %v201 = vld [vmem:[%s177 + $0x3c] sm:$0xf]
        %v202 = vld [vmem:[%s177 + $0x40] sm:$0xf]
        %v203 = vld [vmem:[%s177 + $0x44] sm:$0xf]
        %v204 = vld [vmem:[%s177 + $0x48] sm:$0xf]
        %v205 = vld [vmem:[%s177 + $0x4c] sm:$0xf]
        %v206 = vld [vmem:[%s177 + $0x50] sm:$0xf]
        %v207 = vld [vmem:[%s177 + $0x54] sm:$0xf]
        %v208 = vld [vmem:[%s177 + $0x58] sm:$0xf]
        %v209 = vld [vmem:[%s177 + $0x5c] sm:$0xf]
        %v210 = vld [vmem:[%s177 + $0x60] sm:$0xf]
        %v211 = vld [vmem:[%s177 + $0x64] sm:$0xf]
        %v212 = vld [vmem:[%s177 + $0x68] sm:$0xf]
        %v213 = vld [vmem:[%s177 + $0x6c] sm:$0xf]
        %v214 = vld [vmem:[%s177 + $0x70] sm:$0xf]
        %v215 = vld [vmem:[%s177 + $0x74] sm:$0xf]
        %v216 = vld [vmem:[%s177 + $0x78] sm:$0xf]
        %v217 = vld [vmem:[%s177 + $0x7c] sm:$0xf]
        %v218 = vld [vmem:[%s1] sm:$0xf]
        %v219 = vld [vmem:[%s1 + $0x4] sm:$0xf]
        %v220 = vld [vmem:[%s1 + $0x8] sm:$0xf]
        %v221 = vld [vmem:[%s1 + $0xc] sm:$0xf]
        %v254 = vunpack.c.l.b16 %v186
        %v255 = vunpack.c.l.b16 %v187
        %v256 = vunpack.c.l.b16 %v188
        %v257 = vunpack.c.l.b16 %v189
        %v258 = vunpack.c.l.b16 %v190
        %v259 = vunpack.c.l.b16 %v191
        %v260 = vunpack.c.l.b16 %v192
        %v261 = vunpack.c.l.b16 %v193
        %v262 = vunpack.c.l.b16 %v194
        %v263 = vunpack.c.l.b16 %v195
        %v264 = vunpack.c.l.b16 %v196
        %v265 = vunpack.c.l.b16 %v197
        %v266 = vunpack.c.l.b16 %v198
        %v267 = vunpack.c.l.b16 %v199
        %v268 = vunpack.c.l.b16 %v200
        %v269 = vunpack.c.l.b16 %v201
        %v270 = vunpack.c.l.b16 %v202
        %v271 = vunpack.c.l.b16 %v203
        %v272 = vunpack.c.l.b16 %v204
        %v273 = vunpack.c.l.b16 %v205
        %v274 = vunpack.c.l.b16 %v206
        %v275 = vunpack.c.l.b16 %v207
        %v276 = vunpack.c.l.b16 %v208
        %v277 = vunpack.c.l.b16 %v209
        %v278 = vunpack.c.l.b16 %v210
        %v279 = vunpack.c.l.b16 %v211
        %v280 = vunpack.c.l.b16 %v212
        %v281 = vunpack.c.l.b16 %v213
        %v282 = vunpack.c.l.b16 %v214
        %v283 = vunpack.c.l.b16 %v215
        %v284 = vunpack.c.l.b16 %v216
        %v285 = vunpack.c.l.b16 %v217
        %v286 = vpack.c.b16 %v255, %v254
        %v287 = vpack.c.b16 %v257, %v256
        %v288 = vpack.c.b16 %v259, %v258
        %v289 = vpack.c.b16 %v261, %v260
        %v290 = vpack.c.b16 %v263, %v262
        %v291 = vpack.c.b16 %v265, %v264
        %v292 = vpack.c.b16 %v267, %v266
        %v293 = vpack.c.b16 %v269, %v268
        %v294 = vpack.c.b16 %v271, %v270
        %v295 = vpack.c.b16 %v273, %v272
        %v296 = vpack.c.b16 %v275, %v274
        %v297 = vpack.c.b16 %v277, %v276
        %v298 = vpack.c.b16 %v279, %v278
        %v299 = vpack.c.b16 %v281, %v280
        %v300 = vpack.c.b16 %v283, %v282
        %v301 = vpack.c.b16 %v285, %v284
        %v306 = vunpack.c.l.b16 %v218
        %v307 = vunpack.c.l.b16 %v219
        %v308 = vunpack.c.l.b16 %v220
        %v309 = vunpack.c.l.b16 %v221
        %v310 = vpack.c.b16 %v307, %v306
        %v311 = vpack.c.b16 %v309, %v308
        %vm314 = vcmask 261120
        %v316 = vsel %vm314, %v286, 0
        %v319 = vsel %vm314, %v287, 0
        %v322 = vsel %vm314, %v288, 0
        %v325 = vsel %vm314, %v289, 0
        %v328 = vsel %vm314, %v290, 0
        %v331 = vsel %vm314, %v291, 0
        %v334 = vsel %vm314, %v292, 0
        %v337 = vsel %vm314, %v293, 0
        %v340 = vsel %vm314, %v294, 0
        %v343 = vsel %vm314, %v295, 0
        %v346 = vsel %vm314, %v296, 0
        %v349 = vsel %vm314, %v297, 0
        %v352 = vsel %vm314, %v298, 0
        %v355 = vsel %vm314, %v299, 0
        %v358 = vsel %vm314, %v300, 0
        %v361 = vsel %vm314, %v301, 0
        %363 = vmatpush.bf16.msra.mxu0 0
        %364 = vmatpush.bf16.msra.mxu0 0
        %365 = vmatpush.bf16.msra.mxu0 0
        %366 = vmatpush.bf16.msra.mxu0 0
        %367 = vmatpush.bf16.msra.mxu0 0
        %368 = vmatpush.bf16.msra.mxu0 0
        %369 = vmatpush.bf16.msra.mxu0 %v311
        %370 = vmatpush.bf16.msra.mxu0 %v310
        %371 = vmatmul.bf16.gmra.mxu0 %v316
        %v372 = vpop.f32.mrf.mxu0
        %v373 = vadd.f32 0.0, %v372
        %v374 = vpop.f32.mrf.mxu0
        %v375 = vadd.f32 0.0, %v374
        %376 = vmatmul.bf16.gmra.mxu0 %v319
        %v377 = vpop.f32.mrf.mxu0
        %v378 = vadd.f32 0.0, %v377
        %v379 = vpop.f32.mrf.mxu0
        %v380 = vadd.f32 0.0, %v379
        %381 = vmatmul.bf16.gmra.mxu0 %v322
        %v382 = vpop.f32.mrf.mxu0
        %v383 = vadd.f32 0.0, %v382
        %v384 = vpop.f32.mrf.mxu0
        %v385 = vadd.f32 0.0, %v384
        %386 = vmatmul.bf16.gmra.mxu0 %v325
        %v387 = vpop.f32.mrf.mxu0
        %v388 = vadd.f32 0.0, %v387
        %v389 = vpop.f32.mrf.mxu0
        %v390 = vadd.f32 0.0, %v389
        %391 = vmatmul.bf16.gmra.mxu0 %v328
        %v392 = vpop.f32.mrf.mxu0
        %v393 = vadd.f32 0.0, %v392
        %v394 = vpop.f32.mrf.mxu0
        %v395 = vadd.f32 0.0, %v394
        %396 = vmatmul.bf16.gmra.mxu0 %v331
        %v397 = vpop.f32.mrf.mxu0
        %v398 = vadd.f32 0.0, %v397
        %v399 = vpop.f32.mrf.mxu0
        %v400 = vadd.f32 0.0, %v399
        %401 = vmatmul.bf16.gmra.mxu0 %v334
        %v402 = vpop.f32.mrf.mxu0
        %v403 = vadd.f32 0.0, %v402
        %v404 = vpop.f32.mrf.mxu0
        %v405 = vadd.f32 0.0, %v404
        %406 = vmatmul.bf16.gmra.mxu0 %v337
        %v407 = vpop.f32.mrf.mxu0
        %v408 = vadd.f32 0.0, %v407
        %v409 = vpop.f32.mrf.mxu0
        %v410 = vadd.f32 0.0, %v409
        %411 = vmatmul.bf16.gmra.mxu0 %v340
        %v412 = vpop.f32.mrf.mxu0
        %v413 = vadd.f32 0.0, %v412
        %v414 = vpop.f32.mrf.mxu0
        %v415 = vadd.f32 0.0, %v414
        %416 = vmatmul.bf16.gmra.mxu0 %v343
        %v417 = vpop.f32.mrf.mxu0
        %v418 = vadd.f32 0.0, %v417
        %v419 = vpop.f32.mrf.mxu0
        %v420 = vadd.f32 0.0, %v419
        %421 = vmatmul.bf16.gmra.mxu0 %v346
        %v422 = vpop.f32.mrf.mxu0
        %v423 = vadd.f32 0.0, %v422
        %v424 = vpop.f32.mrf.mxu0
        %v425 = vadd.f32 0.0, %v424
        %426 = vmatmul.bf16.gmra.mxu0 %v349
        %v427 = vpop.f32.mrf.mxu0
        %v428 = vadd.f32 0.0, %v427
        %v429 = vpop.f32.mrf.mxu0
        %v430 = vadd.f32 0.0, %v429
        %431 = vmatmul.bf16.gmra.mxu0 %v352
        %v432 = vpop.f32.mrf.mxu0
        %v433 = vadd.f32 0.0, %v432
        %v434 = vpop.f32.mrf.mxu0
        %v435 = vadd.f32 0.0, %v434
        %436 = vmatmul.bf16.gmra.mxu0 %v355
        %v437 = vpop.f32.mrf.mxu0
        %v438 = vadd.f32 0.0, %v437
        %v439 = vpop.f32.mrf.mxu0
        %v440 = vadd.f32 0.0, %v439
        %441 = vmatmul.bf16.gmra.mxu0 %v358
        %v442 = vpop.f32.mrf.mxu0
        %v443 = vadd.f32 0.0, %v442
        %v444 = vpop.f32.mrf.mxu0
        %v445 = vadd.f32 0.0, %v444
        %446 = vmatmul.bf16.gmra.mxu0 %v361
        %v447 = vpop.f32.mrf.mxu0
        %v448 = vadd.f32 0.0, %v447
        %v449 = vpop.f32.mrf.mxu0
        %v450 = vadd.f32 0.0, %v449
        %451 = vdwg.mxu0
        %v452 = vpack.c.bf16 %v373, %v373
        %v453 = vpack.c.bf16 %v375, %v375
        %v454 = vpack.c.bf16 %v378, %v378
        %v455 = vpack.c.bf16 %v380, %v380
        %v456 = vpack.c.bf16 %v383, %v383
        %v457 = vpack.c.bf16 %v385, %v385
        %v458 = vpack.c.bf16 %v388, %v388
        %v459 = vpack.c.bf16 %v390, %v390
        %v460 = vpack.c.bf16 %v393, %v393
        %v461 = vpack.c.bf16 %v395, %v395
        %v462 = vpack.c.bf16 %v398, %v398
        %v463 = vpack.c.bf16 %v400, %v400
        %v464 = vpack.c.bf16 %v403, %v403
        %v465 = vpack.c.bf16 %v405, %v405
        %v466 = vpack.c.bf16 %v408, %v408
        %v467 = vpack.c.bf16 %v410, %v410
        %v468 = vpack.c.bf16 %v413, %v413
        %v469 = vpack.c.bf16 %v415, %v415
        %v470 = vpack.c.bf16 %v418, %v418
        %v471 = vpack.c.bf16 %v420, %v420
        %v472 = vpack.c.bf16 %v423, %v423
        %v473 = vpack.c.bf16 %v425, %v425
        %v474 = vpack.c.bf16 %v428, %v428
        %v475 = vpack.c.bf16 %v430, %v430
        %v476 = vpack.c.bf16 %v433, %v433
        %v477 = vpack.c.bf16 %v435, %v435
        %v478 = vpack.c.bf16 %v438, %v438
        %v479 = vpack.c.bf16 %v440, %v440
        %v480 = vpack.c.bf16 %v443, %v443
        %v481 = vpack.c.bf16 %v445, %v445
        %v482 = vpack.c.bf16 %v448, %v448
        %v483 = vpack.c.bf16 %v450, %v450
        %vm484 = vcmask 519168
        %485 = vst.msk [vmem:[%s183] sm:$0xf] %vm484, %v452
        %486 = vst.msk [vmem:[%s183 + $0x4] sm:$0xf] %vm484, %v453
        %487 = vst.msk [vmem:[%s183 + $0x8] sm:$0xf] %vm484, %v454
        %488 = vst.msk [vmem:[%s183 + $0xc] sm:$0xf] %vm484, %v455
        %489 = vst.msk [vmem:[%s183 + $0x10] sm:$0xf] %vm484, %v456
        %490 = vst.msk [vmem:[%s183 + $0x14] sm:$0xf] %vm484, %v457
        %491 = vst.msk [vmem:[%s183 + $0x18] sm:$0xf] %vm484, %v458
        %492 = vst.msk [vmem:[%s183 + $0x1c] sm:$0xf] %vm484, %v459
        %493 = vst.msk [vmem:[%s183 + $0x20] sm:$0xf] %vm484, %v460
        %494 = vst.msk [vmem:[%s183 + $0x24] sm:$0xf] %vm484, %v461
        %495 = vst.msk [vmem:[%s183 + $0x28] sm:$0xf] %vm484, %v462
        %496 = vst.msk [vmem:[%s183 + $0x2c] sm:$0xf] %vm484, %v463
        %497 = vst.msk [vmem:[%s183 + $0x30] sm:$0xf] %vm484, %v464
        %498 = vst.msk [vmem:[%s183 + $0x34] sm:$0xf] %vm484, %v465
        %499 = vst.msk [vmem:[%s183 + $0x38] sm:$0xf] %vm484, %v466
        %500 = vst.msk [vmem:[%s183 + $0x3c] sm:$0xf] %vm484, %v467
        %501 = vst.msk [vmem:[%s183 + $0x40] sm:$0xf] %vm484, %v468
        %502 = vst.msk [vmem:[%s183 + $0x44] sm:$0xf] %vm484, %v469
        %503 = vst.msk [vmem:[%s183 + $0x48] sm:$0xf] %vm484, %v470
        %504 = vst.msk [vmem:[%s183 + $0x4c] sm:$0xf] %vm484, %v471
        %505 = vst.msk [vmem:[%s183 + $0x50] sm:$0xf] %vm484, %v472
        %506 = vst.msk [vmem:[%s183 + $0x54] sm:$0xf] %vm484, %v473
        %507 = vst.msk [vmem:[%s183 + $0x58] sm:$0xf] %vm484, %v474
        %508 = vst.msk [vmem:[%s183 + $0x5c] sm:$0xf] %vm484, %v475
        %509 = vst.msk [vmem:[%s183 + $0x60] sm:$0xf] %vm484, %v476
        %510 = vst.msk [vmem:[%s183 + $0x64] sm:$0xf] %vm484, %v477
        %511 = vst.msk [vmem:[%s183 + $0x68] sm:$0xf] %vm484, %v478
        %512 = vst.msk [vmem:[%s183 + $0x6c] sm:$0xf] %vm484, %v479
        %513 = vst.msk [vmem:[%s183 + $0x70] sm:$0xf] %vm484, %v480
        %514 = vst.msk [vmem:[%s183 + $0x74] sm:$0xf] %vm484, %v481
        %515 = vst.msk [vmem:[%s183 + $0x78] sm:$0xf] %vm484, %v482
        %516 = vst.msk [vmem:[%s183 + $0x7c] sm:$0xf] %vm484, %v483
        %vm517 = vcmask 523264
        %v518 = vsel %vm517, %v373, 0.0
        %v519 = vsel %vm517, %v375, 0.0
        %v520 = vadd.f32 %v518, %v519
        %v521 = vsel %vm517, %v378, 0.0
        %v522 = vadd.f32 %v520, %v521
        %v523 = vsel %vm517, %v380, 0.0
        %v524 = vadd.f32 %v522, %v523
        %v525 = vsel %vm517, %v383, 0.0
        %v526 = vadd.f32 %v524, %v525
        %v527 = vsel %vm517, %v385, 0.0
        %v528 = vadd.f32 %v526, %v527
        %v529 = vsel %vm517, %v388, 0.0
        %v530 = vadd.f32 %v528, %v529
        %v531 = vsel %vm517, %v390, 0.0
        %v532 = vadd.f32 %v530, %v531
        %v533 = vsel %vm517, %v393, 0.0
        %v534 = vadd.f32 %v532, %v533
        %v535 = vsel %vm517, %v395, 0.0
        %v536 = vadd.f32 %v534, %v535
        %v537 = vsel %vm517, %v398, 0.0
        %v538 = vadd.f32 %v536, %v537
        %v539 = vsel %vm517, %v400, 0.0
        %v540 = vadd.f32 %v538, %v539
        %v541 = vsel %vm517, %v403, 0.0
        %v542 = vadd.f32 %v540, %v541
        %v543 = vsel %vm517, %v405, 0.0
        %v544 = vadd.f32 %v542, %v543
        %v545 = vsel %vm517, %v408, 0.0
        %v546 = vadd.f32 %v544, %v545
        %v547 = vsel %vm517, %v410, 0.0
        %v548 = vadd.f32 %v546, %v547
        %v549 = vsel %vm517, %v413, 0.0
        %v550 = vadd.f32 %v548, %v549
        %v551 = vsel %vm517, %v415, 0.0
        %v552 = vadd.f32 %v550, %v551
        %v553 = vsel %vm517, %v418, 0.0
        %v554 = vadd.f32 %v552, %v553
        %v555 = vsel %vm517, %v420, 0.0
        %v556 = vadd.f32 %v554, %v555
        %v557 = vsel %vm517, %v423, 0.0
        %v558 = vadd.f32 %v556, %v557
        %v559 = vsel %vm517, %v425, 0.0
        %v560 = vadd.f32 %v558, %v559
        %v561 = vsel %vm517, %v428, 0.0
        %v562 = vadd.f32 %v560, %v561
        %v563 = vsel %vm517, %v430, 0.0
        %v564 = vadd.f32 %v562, %v563
        %v565 = vsel %vm517, %v433, 0.0
        %v566 = vadd.f32 %v564, %v565
        %v567 = vsel %vm517, %v435, 0.0
        %v568 = vadd.f32 %v566, %v567
        %v569 = vsel %vm517, %v438, 0.0
        %v570 = vadd.f32 %v568, %v569
        %v571 = vsel %vm517, %v440, 0.0
        %v572 = vadd.f32 %v570, %v571
        %v573 = vsel %vm517, %v443, 0.0
        %v574 = vadd.f32 %v572, %v573
        %v575 = vsel %vm517, %v445, 0.0
        %v576 = vadd.f32 %v574, %v575
        %v577 = vsel %vm517, %v448, 0.0
        %v578 = vadd.f32 %v576, %v577
        %v579 = vsel %vm517, %v450, 0.0
        %v580 = vadd.f32 %v578, %v579
        %v581 = vrot.slane %v580, 4
        %v582 = vadd.f32 %v580, %v581
        %v583 = vrot.slane %v582, 2
        %v584 = vadd.f32 %v582, %v583
        %v585 = vrot.slane %v584, 1
        %v586 = vadd.f32 %v584, %v585
        %v587 = vmul.f32 %v373, %v373
        %v588 = vmul.f32 %v375, %v375
        %v589 = vmul.f32 %v378, %v378
        %v590 = vmul.f32 %v380, %v380
        %v591 = vmul.f32 %v383, %v383
        %v592 = vmul.f32 %v385, %v385
        %v593 = vmul.f32 %v388, %v388
        %v594 = vmul.f32 %v390, %v390
        %v595 = vmul.f32 %v393, %v393
        %v596 = vmul.f32 %v395, %v395
        %v597 = vmul.f32 %v398, %v398
        %v598 = vmul.f32 %v400, %v400
        %v599 = vmul.f32 %v403, %v403
        %v600 = vmul.f32 %v405, %v405
        %v601 = vmul.f32 %v408, %v408
        %v602 = vmul.f32 %v410, %v410
        %v603 = vmul.f32 %v413, %v413
        %v604 = vmul.f32 %v415, %v415
        %v605 = vmul.f32 %v418, %v418
        %v606 = vmul.f32 %v420, %v420
        %v607 = vmul.f32 %v423, %v423
        %v608 = vmul.f32 %v425, %v425
        %v609 = vmul.f32 %v428, %v428
        %v610 = vmul.f32 %v430, %v430
        %v611 = vmul.f32 %v433, %v433
        %v612 = vmul.f32 %v435, %v435
        %v613 = vmul.f32 %v438, %v438
        %v614 = vmul.f32 %v440, %v440
        %v615 = vmul.f32 %v443, %v443
        %v616 = vmul.f32 %v445, %v445
        %v617 = vmul.f32 %v448, %v448
        %v618 = vmul.f32 %v450, %v450
        %v619 = vsel %vm517, %v587, 0.0
        %v620 = vsel %vm517, %v588, 0.0
        %v621 = vadd.f32 %v619, %v620
        %v622 = vsel %vm517, %v589, 0.0
        %v623 = vadd.f32 %v621, %v622
        %v624 = vsel %vm517, %v590, 0.0
        %v625 = vadd.f32 %v623, %v624
        %v626 = vsel %vm517, %v591, 0.0
        %v627 = vadd.f32 %v625, %v626
        %v628 = vsel %vm517, %v592, 0.0
        %v629 = vadd.f32 %v627, %v628
        %v630 = vsel %vm517, %v593, 0.0
        %v631 = vadd.f32 %v629, %v630
        %v632 = vsel %vm517, %v594, 0.0
        %v633 = vadd.f32 %v631, %v632
        %v634 = vsel %vm517, %v595, 0.0
        %v635 = vadd.f32 %v633, %v634
        %v636 = vsel %vm517, %v596, 0.0
        %v637 = vadd.f32 %v635, %v636
        %v638 = vsel %vm517, %v597, 0.0
        %v639 = vadd.f32 %v637, %v638
        %v640 = vsel %vm517, %v598, 0.0
        %v641 = vadd.f32 %v639, %v640
        %v642 = vsel %vm517, %v599, 0.0
        %v643 = vadd.f32 %v641, %v642
        %v644 = vsel %vm517, %v600, 0.0
        %v645 = vadd.f32 %v643, %v644
        %v646 = vsel %vm517, %v601, 0.0
        %v647 = vadd.f32 %v645, %v646
        %v648 = vsel %vm517, %v602, 0.0
        %v649 = vadd.f32 %v647, %v648
        %v650 = vsel %vm517, %v603, 0.0
        %v651 = vadd.f32 %v649, %v650
        %v652 = vsel %vm517, %v604, 0.0
        %v653 = vadd.f32 %v651, %v652
        %v654 = vsel %vm517, %v605, 0.0
        %v655 = vadd.f32 %v653, %v654
        %v656 = vsel %vm517, %v606, 0.0
        %v657 = vadd.f32 %v655, %v656
        %v658 = vsel %vm517, %v607, 0.0
        %v659 = vadd.f32 %v657, %v658
        %v660 = vsel %vm517, %v608, 0.0
        %v661 = vadd.f32 %v659, %v660
        %v662 = vsel %vm517, %v609, 0.0
        %v663 = vadd.f32 %v661, %v662
        %v664 = vsel %vm517, %v610, 0.0
        %v665 = vadd.f32 %v663, %v664
        %v666 = vsel %vm517, %v611, 0.0
        %v667 = vadd.f32 %v665, %v666
        %v668 = vsel %vm517, %v612, 0.0
        %v669 = vadd.f32 %v667, %v668
        %v670 = vsel %vm517, %v613, 0.0
        %v671 = vadd.f32 %v669, %v670
        %v672 = vsel %vm517, %v614, 0.0
        %v673 = vadd.f32 %v671, %v672
        %v674 = vsel %vm517, %v615, 0.0
        %v675 = vadd.f32 %v673, %v674
        %v676 = vsel %vm517, %v616, 0.0
        %v677 = vadd.f32 %v675, %v676
        %v678 = vsel %vm517, %v617, 0.0
        %v679 = vadd.f32 %v677, %v678
        %v680 = vsel %vm517, %v618, 0.0
        %v681 = vadd.f32 %v679, %v680
        %v682 = vrot.slane %v681, 4
        %v683 = vadd.f32 %v681, %v682
        %v684 = vrot.slane %v683, 2
        %v685 = vadd.f32 %v683, %v684
        %v686 = vrot.slane %v685, 1
        %v687 = vadd.f32 %v685, %v686
        %vm688 = vcmask 1040384
        %v689 = vsel %vm688, %v586, %v687
        %vm690 = vcmask 517120
        %691 = vst.msk [vmem:[%s172] sm:$0x3] %vm690, %v689
        %s692 = smul.u32 32, %s18
        %p693 = scmp.lt.s32.totalorder %s692, 63
        %s694 = scalar_select %p693, %s692, 63
        %s695 = smul.addr %s694, 4
        %s696 = scalar_lea.vmem %s2, %s695
        %s697 = sand.u32 %s99, 1
        %s698 = scalar_lea.sflag [#allocation3], %s697
        %s699 = sand.u32 %s99, 1
        %s700 = smul.addr %s699, 2
        %s701 = scalar_lea.vmem [#allocation2], %s700
        // Predicated region
        $region29: #{tpu_custom_call.1} parent=27 // pred_check
          %p702 = pneg %p83
        $region30: #{tpu_custom_call.1} parent=27 // pred_check_branch
          %704 = sbr.rel (%p702) target = $region32
        $region31: #{tpu_custom_call.1} parent=27 // pred_region
          %s705 = smul.u32 32, %s18
        $region32: #{tpu_custom_call.1} parent=27 // pred_fallthru
          _
        // Predicated region
        $region33: #{tpu_custom_call.1} parent=27 // pred_check
          %p706 = pneg %p109
        $region34: #{tpu_custom_call.1} parent=27 // pred_check_branch
          %708 = sbr.rel (%p706) target = $region36
        $region35: #{tpu_custom_call.1} parent=27 // pred_region
          %710 = vsyncadd %s698, 0
          %s711 = smul.addr %s18, 2
          %s712 = scalar_lea.hbm %s3, %s711
          %s714 = sshll.u32 %s701, 4
          %s715 = int_to_ptr.vmem [resolvable:$true] %s714
          %s716 = sshll.u32 %s712, 4
          %s717 = int_to_ptr.hbm [resolvable:$true] %s716
          %719 = dma.vmem_to_hbm [thread:$0]  %s715, 32, %s717, %s698
        $region36: #{tpu_custom_call.1} parent=27 // pred_fallthru
          _
      $region28: #{tpu_custom_call.1} parent=5 // pred_fallthru
        _
      %p720 = scmp.le.s32.totalorder 2, %s13
      // Predicated region
      $region37: #{tpu_custom_call.1} parent=5 // pred_check
        %p721 = pneg %p720
      $region38: #{tpu_custom_call.1} parent=5 // pred_check_branch
        %723 = sbr.rel (%p721) target = $region40
      $region39: #{tpu_custom_call.1} parent=5 // pred_region
        %s724 = ssub.s32 %s13, 2
        // Predicated region
        $region41: #{tpu_custom_call.1} parent=39 // pred_check
          %p725 = pneg %p89
        $region42: #{tpu_custom_call.1} parent=39 // pred_check_branch
          %727 = sbr.rel (%p725) target = $region44
        $region43: #{tpu_custom_call.1} parent=39 // pred_region
          %s728 = smul.u32 32, %s19
          %p729 = scmp.lt.s32.totalorder %s728, 63
          %s730 = scalar_select %p729, %s728, 63
          %s731 = smul.addr %s730, 4
          %s732 = scalar_lea.vmem %s2, %s731
        $region44: #{tpu_custom_call.1} parent=39 // pred_fallthru
          _
        // Predicated region
        $region45: #{tpu_custom_call.1} parent=39 // pred_check
          %p733 = pneg %p115
        $region46: #{tpu_custom_call.1} parent=39 // pred_check_branch
          %735 = sbr.rel (%p733) target = $region48
        $region47: #{tpu_custom_call.1} parent=39 // pred_region
          %s736 = sand.u32 %s100, 1
          %s737 = scalar_lea.sflag [#allocation3], %s736
          %s738 = sand.u32 %s100, 1
          %s739 = smul.addr %s738, 2
          %s740 = scalar_lea.vmem [#allocation2], %s739
          %742 = dma.done %s737, 32
        $region48: #{tpu_custom_call.1} parent=39 // pred_fallthru
          _
      $region40: #{tpu_custom_call.1} parent=5 // pred_fallthru
        _
    $region6: #{tpu_custom_call.1} parent=1 // loop_footer
      %s17 = sadd.s32 1, %s13
    $region7: #{tpu_custom_call.1} parent=1 // loop_footer_branch
      %12 = sbr.rel target = $region3
    $region8: #{tpu_custom_call.1} parent=1 // loop_exit
      _
    %743 = vsyncpa [#allocation3], 1
    %s744 = scalar_lea.sflag [#allocation3], 1
    %745 = vsyncpa %s744, 1

</llo_original>
